<compile_context>
chip_gen: v6e
topology: v6e:2x2x1
jax: 0.10.0
libtpu: 0.0.40
codegen_flags: <defaults>
</compile_context>

<pallas_src>
import jax
import jax.numpy as jnp
from jax import lax
from jax.experimental import pallas as pl
from jax.experimental.pallas import tpu as pltpu


# --------------------------------------------------------------------------
# Kernel
# --------------------------------------------------------------------------
def _gaussian_kernel(h_ref, w_ref, b_ref, out_ref):
    # h_ref: (tm, H), w_ref: (H, 2*O), b_ref: (1, 2*O), out_ref: (tm, 2*O)
    # Keep MXU operands in native dtype (bf16 fast path); accumulate in f32.
    y = jnp.dot(h_ref[...], w_ref[...], preferred_element_type=jnp.float32)
    y = y + b_ref[...].astype(jnp.float32)                     # (tm, 2*O)

    # Numerically stable softplus on every lane (EUP work, effectively free
    # next to the matmul), then select per lane:
    #   first O lanes -> mu (identity), last O lanes -> sigma (softplus+1e-6).
    softplus = jnp.maximum(y, 0.0) + jnp.log1p(jnp.exp(-jnp.abs(y))) + 1e-6
    two_o = out_ref.shape[-1]
    lane = lax.broadcasted_iota(jnp.int32, y.shape, dimension=1)
    out = jnp.where(lane < (two_o // 2), y, softplus)
    out_ref[...] = out.astype(out_ref.dtype)


# --------------------------------------------------------------------------
# Tiling helpers
# --------------------------------------------------------------------------
def _row_granularity(dtype):
    # Sublane packing: 8 rows per vreg for 32-bit, 16 for 16-bit, 32 for 8-bit.
    return {4: 8, 2: 16, 1: 32}.get(jnp.dtype(dtype).itemsize, 8)


def _round_up(x, m):
    return -(-x // m) * m


def _choose_tile(B, H, O2, h_dtype, out_dtype):
    gran = max(_row_granularity(h_dtype), _row_granularity(out_dtype))
    h_it = jnp.dtype(h_dtype).itemsize
    o_it = jnp.dtype(out_dtype).itemsize

    # Byte-budget-driven tile: ~2 MiB of h per block, and keep the
    # double-buffered (h + out) blocks under ~16 MiB of VMEM.
    tm = (2 * 1024 * 1024) // max(1, H * h_it)
    tm = min(tm, (16 * 1024 * 1024) // max(1, 2 * (H * h_it + O2 * o_it)))
    tm = max(gran, (tm // gran) * gran)

    # v7x: guarantee >= 2 grid steps when the batch allows it, so the
    # ("parallel",) axis spans both TensorCores.
    if B >= 2 * gran:
        tm = min(tm, _round_up((B + 1) // 2, gran))

    # Never bigger than the (padded) batch.
    tm = min(tm, _round_up(B, gran))
    return tm


# --------------------------------------------------------------------------
# Parameter fusion (hoist out of the per-call / decode-loop path)
# --------------------------------------------------------------------------
def fuse_gaussian_params(w_mu, b_mu, w_sigma, b_sigma):
    """Fuse the two linear heads into one (H, 2*O) weight and (1, 2*O) bias.

    Call once at parameter setup (outside any decode scan) so XLA does not
    re-materialize the concat in HBM on every step."""
    w = jnp.concatenate([w_mu, w_sigma], axis=1)                 # (H, 2*O)
    b = jnp.concatenate([b_mu, b_sigma], axis=0).reshape(1, -1)  # (1, 2*O)
    return w, b


# --------------------------------------------------------------------------
# Forward
# --------------------------------------------------------------------------
def gaussian_forward_fused(h, w, b):
    """h: (B, H); w: (H, 2*O) fused weights; b: (1, 2*O) fused bias.

    Returns (mu, sigma), each (B, O) in h.dtype, squeezed along dim 0 iff
    B == 1 (matching torch's .squeeze(0))."""
    B, H = h.shape
    O2 = w.shape[1]
    O = O2 // 2
    out_dtype = h.dtype

    h_it = jnp.dtype(h.dtype).itemsize
    w_it = jnp.dtype(w.dtype).itemsize
    b_it = jnp.dtype(b.dtype).itemsize
    o_it = jnp.dtype(out_dtype).itemsize

    tm = _choose_tile(B, H, O2, h.dtype, out_dtype)
    n_blocks = pl.cdiv(B, tm)
    B_pad = n_blocks * tm
    grid = (n_blocks,)

    # Wrapper-side padding so every grid block is full (no ragged tail).
    h_in = jnp.pad(h, ((0, B_pad - B), (0, 0))) if B_pad != B else h

    # Explicit VMEM budget: h + out double-buffered, W/b (constant index)
    # double-buffered by default but tiny at these shapes.
    vmem_need = (2 * tm * H * h_it
                 + 2 * tm * O2 * o_it
                 + 2 * H * O2 * w_it
                 + 2 * O2 * b_it)
    vmem_limit = int(min(max(vmem_need + (8 << 20), 24 << 20), 56 << 20))

    cost = pl.CostEstimate(
        flops=2 * B_pad * H * O2,
        transcendentals=2 * B_pad * O2,               # exp + log1p per element
        bytes_accessed=(B_pad * H * h_it + H * O2 * w_it + O2 * b_it
                        + B_pad * O2 * o_it),
    )

    out = pl.pallas_call(
        _gaussian_kernel,
        out_shape=jax.ShapeDtypeStruct((B_pad, O2), out_dtype),
        grid=grid,
        in_specs=[
            pl.BlockSpec((tm, H), lambda i: (i, 0)),    # h       (pipelined)
            pl.BlockSpec((H, O2), lambda i: (0, 0)),    # fused W (resident)
            pl.BlockSpec((1, O2), lambda i: (0, 0)),    # fused b (resident)
        ],
        out_specs=pl.BlockSpec((tm, O2), lambda i: (i, 0)),
        compiler_params=pltpu.CompilerParams(
            dimension_semantics=("parallel",),
            vmem_limit_bytes=vmem_limit,
        ),
        cost_estimate=cost,
    )(h_in, w, b)

    out = out[:B]
    mu = out[:, :O]
    sigma = out[:, O:]

    # torch .squeeze(0): only drops dim 0 when it is size 1.
    if B == 1:
        mu = mu[0]
        sigma = sigma[0]
    return mu, sigma


def gaussian_forward(h, w_mu, b_mu, w_sigma, b_sigma):
    """Convenience wrapper. For decode loops, call fuse_gaussian_params()
    once and use gaussian_forward_fused() per step instead."""
    w, b = fuse_gaussian_params(w_mu, b_mu, w_sigma, b_sigma)
    return gaussian_forward_fused(h, w, b)


# --------------------------------------------------------------------------
# Self-test
# --------------------------------------------------------------------------
if __name__ == "__main__":
    hidden_size = 32
    output_size = 16
    batch = 8

    key = jax.random.PRNGKey(0)
    k_h, k_wm, k_bm, k_ws, k_bs = jax.random.split(key, 5)

    # Deterministic init mimicking nn.Linear default: U(-1/sqrt(H), 1/sqrt(H)).
    bound = 1.0 / jnp.sqrt(jnp.float32(hidden_size))
    h = jax.random.normal(k_h, (batch, hidden_size), dtype=jnp.float32)
    w_mu = jax.random.uniform(k_wm, (hidden_size, output_size),
                              minval=-bound, maxval=bound, dtype=jnp.float32)
    b_mu = jax.random.uniform(k_bm, (output_size,),
                              minval=-bound, maxval=bound, dtype=jnp.float32)
    w_sigma = jax.random.uniform(k_ws, (hidden_size, output_size),
                                 minval=-bound, maxval=bound, dtype=jnp.float32)
    b_sigma = jax.random.uniform(k_bs, (output_size,),
                                 minval=-bound, maxval=bound, dtype=jnp.float32)

    # Fuse the two heads ONCE (hoisted out of the per-call path).
    w_fused, b_fused = fuse_gaussian_params(w_mu, b_mu, w_sigma, b_sigma)

    mu, sigma = gaussian_forward_fused(h, w_fused, b_fused)
    jax.block_until_ready((mu, sigma))

    # Pure-JAX reference check (literal PyTorch formula; values are small so
    # the unstable form is fine as a reference).
    mu_ref = h @ w_mu + b_mu
    sigma_ref = jnp.log1p(jnp.exp(h @ w_sigma + b_sigma)) + 1e-6
    assert mu.shape == (batch, output_size)
    assert sigma.shape == (batch, output_size)
    assert jnp.allclose(mu, mu_ref, atol=1e-5, rtol=1e-5)
    assert jnp.allclose(sigma, sigma_ref, atol=1e-5, rtol=1e-5)

    # Also exercise the batch=1 squeeze path, matching torch .squeeze(0).
    mu1, sigma1 = gaussian_forward_fused(h[:1], w_fused, b_fused)
    jax.block_until_ready((mu1, sigma1))
    assert mu1.shape == (output_size,) and sigma1.shape == (output_size,)
    assert jnp.allclose(mu1, mu_ref[0], atol=1e-5, rtol=1e-5)
    assert jnp.allclose(sigma1, sigma_ref[0], atol=1e-5, rtol=1e-5)

    # And the convenience (non-hoisted) wrapper.
    mu2, sigma2 = gaussian_forward(h, w_mu, b_mu, w_sigma, b_sigma)
    jax.block_until_ready((mu2, sigma2))
    assert jnp.allclose(mu2, mu_ref, atol=1e-5, rtol=1e-5)
    assert jnp.allclose(sigma2, sigma_ref, atol=1e-5, rtol=1e-5)

    print("KERNEL_OK")
</pallas_src>

<mosaic_0001>
module attributes {stable_mosaic.version = 11 : i64} {
  func.func @_gaussian_kernel(%arg0: i32, %arg1: memref<8x32xf32, #tpu.memory_space<vmem>>, %arg2: memref<32x32xf32, #tpu.memory_space<vmem>>, %arg3: memref<1x32xf32, #tpu.memory_space<vmem>>, %arg4: memref<8x32xf32, #tpu.memory_space<vmem>>) attributes {dimension_semantics = [#tpu.dimension_semantics<parallel>], iteration_bounds = array<i64: 1>, scalar_prefetch = 0 : i64, scratch_operands = 0 : i64, tpu.core_type = #tpu.core_type<tc>, window_params = [{transform_indices = @transform_0, window_bounds = array<i64: 8, 32>}, {pipeline_mode = #tpu.pipeline_mode<synchronous>, transform_indices = @transform_1, window_bounds = array<i64: 32, 32>}, {pipeline_mode = #tpu.pipeline_mode<synchronous>, transform_indices = @transform_2, window_bounds = array<i64: 1, 32>}, {transform_indices = @transform_3, window_bounds = array<i64: 8, 32>}]} {
    %c0 = arith.constant 0 : index
    %c0_0 = arith.constant 0 : index
    %0 = vector.load %arg1[%c0, %c0_0] : memref<8x32xf32, #tpu.memory_space<vmem>>, vector<8x32xf32>
    %c0_1 = arith.constant 0 : index
    %c0_2 = arith.constant 0 : index
    %1 = vector.load %arg2[%c0_1, %c0_2] : memref<32x32xf32, #tpu.memory_space<vmem>>, vector<32x32xf32>
    %cst = arith.constant dense<0.000000e+00> : vector<8x32xf32>
    %2 = tpu.matmul %0, %1, %cst {dimension_numbers = #tpu.dot_dimension_numbers<[1], [0], [0], [1], [0, 0, 1, 1], [], []>} : vector<8x32xf32>, vector<32x32xf32>, vector<8x32xf32> -> vector<8x32xf32>
    %c0_3 = arith.constant 0 : index
    %c0_4 = arith.constant 0 : index
    %3 = vector.load %arg3[%c0_3, %c0_4] : memref<1x32xf32, #tpu.memory_space<vmem>>, vector<1x32xf32>
    %4 = vector.broadcast %3 : vector<1x32xf32> to vector<8x32xf32>
    %5 = arith.addf %2, %4 : vector<8x32xf32>
    %cst_5 = arith.constant 0.000000e+00 : f32
    %6 = vector.broadcast %cst_5 : f32 to vector<8x32xf32>
    %7 = arith.maximumf %5, %6 : vector<8x32xf32>
    %8 = math.absf %5 : vector<8x32xf32>
    %cst_6 = arith.constant 0.000000e+00 : f32
    %9 = vector.broadcast %cst_6 : f32 to vector<8x32xf32>
    %10 = arith.subf %9, %8 : vector<8x32xf32>
    %11 = math.exp %10 : vector<8x32xf32>
    %12 = math.log1p %11 : vector<8x32xf32>
    %13 = arith.addf %7, %12 : vector<8x32xf32>
    %cst_7 = arith.constant 9.99999997E-7 : f32
    %14 = vector.broadcast %cst_7 : f32 to vector<8x32xf32>
    %15 = arith.addf %13, %14 : vector<8x32xf32>
    %16 = tpu.iota {dimensions = array<i32: 1>} : vector<8x32xi32>
    %c16_i32 = arith.constant 16 : i32
    %17 = vector.broadcast %c16_i32 : i32 to vector<8x32xi32>
    %18 = arith.cmpi slt, %16, %17 : vector<8x32xi32>
    %19 = arith.select %18, %5, %15 : vector<8x32xi1>, vector<8x32xf32>
    %c0_8 = arith.constant 0 : index
    %c0_9 = arith.constant 0 : index
    %20 = vector.load %arg4[%c0_8, %c0_9] : memref<8x32xf32, #tpu.memory_space<vmem>>, vector<8x32xf32>
    tpu.vector_store %arg4[%c0_8, %c0_9], %19 {strides = array<i32>} : memref<8x32xf32, #tpu.memory_space<vmem>>, vector<8x32xf32>,
    return
  }
  func.func @transform_0(%arg0: i32) -> (i32, i32) {
    %c0_i32 = arith.constant 0 : i32
    %c0_i32_0 = arith.constant 0 : i32
    return %arg0, %c0_i32 : i32, i32
  }
  func.func @transform_1(%arg0: i32) -> (i32, i32) {
    %c0_i32 = arith.constant 0 : i32
    %c0_i32_0 = arith.constant 0 : i32
    %c0_i32_1 = arith.constant 0 : i32
    return %c0_i32, %c0_i32_0 : i32, i32
  }
  func.func @transform_2(%arg0: i32) -> (i32, i32) {
    %c0_i32 = arith.constant 0 : i32
    %c0_i32_0 = arith.constant 0 : i32
    %c0_i32_1 = arith.constant 0 : i32
    return %c0_i32, %c0_i32_0 : i32, i32
  }
  func.func @transform_3(%arg0: i32) -> (i32, i32) {
    %c0_i32 = arith.constant 0 : i32
    %c0_i32_0 = arith.constant 0 : i32
    return %arg0, %c0_i32 : i32, i32
  }
}

</mosaic_0001>

<llo_original>
// kernel: tpu_custom_call.1
$region0: #{tpu_custom_call.1}
  #allocation0 [shape = 'u32[]', space=smem, size = 0x4, offset = 0x4, fixed_abs, tag = 'smem constant byte address 0x4 - core index']
  #allocation1 [shape = 'u32[144,128]{1,0:T(1,128)}', space=vmem, size = 0x12000, scoped, tag = 'internal scratch']
  %s0 = inlined_call_operand.hbm [shape: f32[8,32], index: 0, kind: input, shape index: {}]
  %s1 = inlined_call_operand.hbm [shape: f32[32,32], index: 1, kind: input, shape index: {}]
  %s2 = inlined_call_operand.vmem [shape: f32[1,32], index: 2, kind: input, shape index: {}]
  %s3 = inlined_call_operand.hbm [shape: f32[8,32], index: 3, kind: output, shape index: {}]
  %s4 = sld [smem:[#allocation0]]
  $region30: #{tpu_custom_call.1} parent=0
    _
  %s6 = ssub.s32 1, %s4
  %s7 = scalar_select 0, %s6, %s4
  $region1: #{tpu_custom_call.1} parent=0
    #allocation2 [shape = 'u8[4096]{0}', space=vmem, size = 0x1000, scoped, tag = 'input window, operand 0, single buffered']
    #allocation3 [shape = 's32[1]{0}', space=sflag, size = 0x4, scoped, tag = 'scoped memory for tpu_custom_call.1']
    #allocation4 [shape = 's32[1]{0}', space=sflag, size = 0x4, scoped, tag = 'scoped memory for tpu_custom_call.1']
    #allocation5 [shape = 'u8[16384]{0}', space=vmem, size = 0x4000, scoped, tag = 'input window, operand 1, single buffered']
    #allocation6 [shape = 's32[1]{0}', space=sflag, size = 0x4, scoped, tag = 'scoped memory for tpu_custom_call.1']
    #allocation7 [shape = 'u8[4096]{0}', space=vmem, size = 0x1000, scoped, tag = 'output window, operand 0, single buffered']
    %8 = vsyncpa [#allocation3], 0
    %9 = vsyncpa [#allocation6], 0
    %10 = vsyncpa [#allocation4], 0
    // Predicated region
    $region2: #{tpu_custom_call.1} parent=1 // pred_check
      _
    $region3: #{tpu_custom_call.1} parent=1 // pred_check_branch
      %12 = sbr.rel (0) target = $region5
    $region4: #{tpu_custom_call.1} parent=1 // pred_region
      %s14 = ssub.s32 128, 128
      %15 = vsyncadd [#allocation3], %s14
      %s17 = sshll.u32 [#allocation2], 4
      %s18 = int_to_ptr.vmem [resolvable:$true] %s17
      %20 = dma.hbm_to_vmem [thread:$0]  %s0, 128, %s18, [#allocation3]
    $region5: #{tpu_custom_call.1} parent=1 // pred_fallthru
      _
    // Predicated region
    $region6: #{tpu_custom_call.1} parent=1 // pred_check
      _
    $region7: #{tpu_custom_call.1} parent=1 // pred_check_branch
      %22 = sbr.rel (0) target = $region9
    $region8: #{tpu_custom_call.1} parent=1 // pred_region
      %s24 = ssub.s32 512, 512
      %25 = vsyncadd [#allocation6], %s24
      %s26 = sshll.u32 [#allocation5], 4
      %s27 = int_to_ptr.vmem [resolvable:$true] %s26
      %32 = dma.hbm_to_vmem [thread:$0]  %s1, 512, %s27, [#allocation6], 128, 128, 8
    $region9: #{tpu_custom_call.1} parent=1 // pred_fallthru
      _
    // Predicated region
    $region10: #{tpu_custom_call.1} parent=1 // pred_check
      _
    $region11: #{tpu_custom_call.1} parent=1 // pred_check_branch
      %34 = sbr.rel (0) target = $region13
    $region12: #{tpu_custom_call.1} parent=1 // pred_region
      _
    $region13: #{tpu_custom_call.1} parent=1 // pred_fallthru
      _
    // Predicated region
    $region14: #{tpu_custom_call.1} parent=1 // pred_check
      _
    $region15: #{tpu_custom_call.1} parent=1 // pred_check_branch
      %36 = sbr.rel (0) target = $region17
    $region16: #{tpu_custom_call.1} parent=1 // pred_region
      %37 = dma.done [#allocation3], 128
    $region17: #{tpu_custom_call.1} parent=1 // pred_fallthru
      _
    // Predicated region
    $region18: #{tpu_custom_call.1} parent=1 // pred_check
      _
    $region19: #{tpu_custom_call.1} parent=1 // pred_check_branch
      %39 = sbr.rel (0) target = $region21
    $region20: #{tpu_custom_call.1} parent=1 // pred_region
      %40 = dma.done [#allocation6], 512
    $region21: #{tpu_custom_call.1} parent=1 // pred_fallthru
      _
    %v41 = vld [vmem:[#allocation2] sm:$0xff]
    %v42 = vld [vmem:[#allocation5] sm:$0xff]
    %v43 = vld [vmem:[#allocation5 + $0x8] sm:$0xff]
    %v44 = vld [vmem:[#allocation5 + $0x10] sm:$0xff]
    %v45 = vld [vmem:[#allocation5 + $0x18] sm:$0xff]
    %v46 = vld [vmem:[%s2] sm:$0x1]
    %v48 = vlaneseq
    %v49 = vshrl.u32 %v48, 7
    %v50 = vsub.s32 0, %v49
    %v51 = vrot.slane %v46, %v50
    %vm53 = vcmask 261120
    %v55 = vsel %vm53, %v41, 0
    %57 = vmatprep.subr.mxu0 0.0
    %58 = vmatpush1.msra.mxu0 0.0
    %59 = vmatprep.subr.mxu0 0.0
    %60 = vmatpush1.msra.mxu0 0.0
    %61 = vmatprep.subr.mxu0 0.0
    %62 = vmatpush1.msra.mxu0 0.0
    %63 = vmatprep.subr.mxu0 0.0
    %64 = vmatpush1.msra.mxu0 0.0
    %65 = vmatprep.subr.mxu0 0.0
    %66 = vmatpush1.msra.mxu0 0.0
    %67 = vmatprep.subr.mxu0 0.0
    %68 = vmatpush1.msra.mxu0 0.0
    %69 = vmatprep.subr.mxu0 0.0
    %70 = vmatpush1.msra.mxu0 0.0
    %71 = vmatprep.subr.mxu0 0.0
    %72 = vmatpush1.msra.mxu0 0.0
    %73 = vmatprep.subr.mxu0 0.0
    %74 = vmatpush1.msra.mxu0 0.0
    %75 = vmatprep.subr.mxu0 0.0
    %76 = vmatpush1.msra.mxu0 0.0
    %77 = vmatprep.subr.mxu0 0.0
    %78 = vmatpush1.msra.mxu0 0.0
    %79 = vmatprep.subr.mxu0 0.0
    %80 = vmatpush1.msra.mxu0 0.0
    %81 = vmatprep.subr.mxu0 0.0
    %82 = vmatpush1.msra.mxu0 %v45
    %83 = vmatprep.subr.mxu0 0.0
    %84 = vmatpush1.msra.mxu0 %v44
    %85 = vmatprep.subr.mxu0 0.0
    %86 = vmatpush1.msra.mxu0 %v43
    %87 = vmatprep.subr.mxu0 0.0
    %88 = vmatpush1.msra.mxu0 %v42
    %89 = vmatprep.subr.mxu0 0.0
    %90 = vmatpush2.msra.mxu0 0.0
    %91 = vmatprep.subr.mxu0 0.0
    %92 = vmatpush2.msra.mxu0 0.0
    %93 = vmatprep.subr.mxu0 0.0
    %94 = vmatpush2.msra.mxu0 0.0
    %95 = vmatprep.subr.mxu0 0.0
    %96 = vmatpush2.msra.mxu0 0.0
    %97 = vmatprep.subr.mxu0 0.0
    %98 = vmatpush2.msra.mxu0 0.0
    %99 = vmatprep.subr.mxu0 0.0
    %100 = vmatpush2.msra.mxu0 0.0
    %101 = vmatprep.subr.mxu0 0.0
    %102 = vmatpush2.msra.mxu0 0.0
    %103 = vmatprep.subr.mxu0 0.0
    %104 = vmatpush2.msra.mxu0 0.0
    %105 = vmatprep.subr.mxu0 0.0
    %106 = vmatpush2.msra.mxu0 0.0
    %107 = vmatprep.subr.mxu0 0.0
    %108 = vmatpush2.msra.mxu0 0.0
    %109 = vmatprep.subr.mxu0 0.0
    %110 = vmatpush2.msra.mxu0 0.0
    %111 = vmatprep.subr.mxu0 0.0
    %112 = vmatpush2.msra.mxu0 0.0
    %113 = vmatprep.subr.mxu0 0.0
    %114 = vmatpush2.msra.mxu0 0.0
    %115 = vmatprep.subr.mxu0 0.0
    %116 = vmatpush2.msra.mxu0 0.0
    %117 = vmatprep.subr.mxu0 0.0
    %118 = vmatpush2.msra.mxu0 0.0
    %119 = vmatprep.subr.mxu0 0.0
    %120 = vmatpush2.msra.mxu0 0.0
    %121 = vmatprep.mubr.f32.mxu0 0.0
    %122 = vmatmul.mubr.f32.gmra.mxu0 %v55
    %v123 = vpop.f32.mrf.mxu0
    %v124 = vadd.f32 %v51, %v123
    %v125 = vpop.f32.mrf.mxu0
    %126 = vdwg.mxu0
    %v127 = vmax.f32 %v124, 0.0
    %v128 = vand.u32 2147483647, %v124
    %v129 = vsub.f32 0.0, %v128
    %v130 = vmul.f32 %v129, 1.442695
    %v131 = vpow.pop %v130
    %v132 = vadd.f32 %v131, 1.0
    %v133 = vlog2.pop %v132
    %v134 = vmul.f32 %v133, 0.6931472
    %v135 = vmul.f32 -0.5, %v131
    %v136 = vadd.f32 %v135, 1.0
    %v137 = vmul.f32 %v136, %v131
    %v138 = vand.u32 2147483647, %v131
    %vm139 = vcmp.lt.f32.partialorder %v138, 0.0004427343
    %v140 = vsel %vm139, %v137, %v134
    %v141 = vadd.f32 %v127, %v140
    %v142 = vadd.f32 %v141, 1e-06
    %v143 = vlaneseq
    %v144 = vand.u32 %v143, 127
    %vm145 = vcmp.lt.s32.totalorder %v144, 16
    %v146 = vsel %vm145, %v124, %v142
    %147 = vst.msk [vmem:[#allocation7] sm:$0xff] %vm53, %v146
    // Predicated region
    $region22: #{tpu_custom_call.1} parent=1 // pred_check
      _
    $region23: #{tpu_custom_call.1} parent=1 // pred_check_branch
      %149 = sbr.rel (0) target = $region25
    $region24: #{tpu_custom_call.1} parent=1 // pred_region
      %s151 = ssub.s32 128, 128
      %152 = vsyncadd [#allocation4], %s151
      %s154 = sshll.u32 [#allocation7], 4
      %s155 = int_to_ptr.vmem [resolvable:$true] %s154
      %157 = dma.vmem_to_hbm [thread:$0]  %s155, 128, %s3, [#allocation4]
    $region25: #{tpu_custom_call.1} parent=1 // pred_fallthru
      _
    // Predicated region
    $region26: #{tpu_custom_call.1} parent=1 // pred_check
      _
    $region27: #{tpu_custom_call.1} parent=1 // pred_check_branch
      %159 = sbr.rel (0) target = $region29
    $region28: #{tpu_custom_call.1} parent=1 // pred_region
      %160 = dma.done [#allocation4], 128
    $region29: #{tpu_custom_call.1} parent=1 // pred_fallthru
      _
    %161 = vsyncpa [#allocation3], 1
    %162 = vsyncpa [#allocation6], 1
    %163 = vsyncpa [#allocation4], 1

</llo_original>
